<compile_context>
chip_gen: v5e
topology: v5e:2x2
jax: 0.10.0
libtpu: 0.0.40
codegen_flags: <defaults>
</compile_context>

<pallas_src>
import jax
import jax.numpy as jnp
from jax import lax
from jax.experimental import pallas as pl
from jax.experimental.pallas import tpu as pltpu


# ----------------------------------------------------------------------------
# Stacked spectral filter (all layers fused), per lane-dense feature tile.
# ----------------------------------------------------------------------------
def _make_stacked_filter_kernel(K: int, layers: int, use_bf16_matmul: bool):
    mm_dtype = jnp.bfloat16 if use_bf16_matmul else jnp.float32

    def kernel(a_ref, b_ref, c_ref, alpha_ref, x_ref, lam_ref, u_ref, out_ref):
        lam = lam_ref[...]                                  # [N, N] f32
        u = u_ref[...]                                      # [N, N] f32
        n = lam.shape[0]

        # ---- loop invariants: hoisted across all layers and all K filters ----
        row = lax.broadcasted_iota(jnp.int32, (n, n), 0)
        col = lax.broadcasted_iota(jnp.int32, (n, n), 1)
        eye = jnp.where(row == col, jnp.float32(1.0), jnp.float32(0.0))
        lam2 = jnp.dot(lam, lam, preferred_element_type=jnp.float32)   # Λ² (once)
        u_mm = u.astype(mm_dtype)
        alpha = alpha_ref[0]

        h = x_ref[...]                                      # [N, TF] layer input
        for _layer in range(layers):                        # static trip count
            # U^T @ h without materializing the transpose (contract axis 0 / axis 0).
            utx = lax.dot_general(u_mm, h.astype(mm_dtype),
                                  (((0,), (0,)), ((), ())),
                                  preferred_element_type=jnp.float32)   # [N, TF]
            utx_mm = utx.astype(mm_dtype)

            acc = jnp.zeros_like(utx)                       # Σ_i scale_i·relu(F_i)·Uᵀh
            for i in range(K):                              # static trip count
                a = a_ref[i]
                b = b_ref[i]
                c = c_ref[i]
                scale = c / ((a - b) * (a - b) / 4.0)
                # (a·I − Λ)(Λ − b·I) == (a+b)·Λ − Λ² − a·b·I   (pure elementwise now)
                filt = jnp.maximum((a + b) * lam - lam2 - (a * b) * eye, 0.0)
                mid = jnp.dot(filt.astype(mm_dtype), utx_mm,
                              preferred_element_type=jnp.float32)       # [N, TF]
                acc = acc + scale * mid                     # scale folded before U@(.)

            # out = residual_alpha·h + U @ Σ_i(...)   (single U matmul per layer)
            h = alpha * h + jnp.dot(u_mm, acc.astype(mm_dtype),
                                    preferred_element_type=jnp.float32)

        out_ref[...] = h                                    # one lane-dense store

    return kernel


# ----------------------------------------------------------------------------
# layer_normalize: per-node min/max over (batch, lag), done on a [node, batch*lag]
# layout so the reduction is a single lane-axis min/max.
# ----------------------------------------------------------------------------
def _layer_normalize_kernel(x_ref, o_ref):
    x = x_ref[...]                                          # [node_num, batch*lag]
    mn = jnp.min(x, axis=-1, keepdims=True)
    mx = jnp.max(x, axis=-1, keepdims=True)
    o_ref[...] = (x - mn) / (mx - mn + jnp.float32(1e-8))


def layer_normalize(batch_x):
    B, Nn, L = batch_x.shape
    x2 = jnp.transpose(batch_x, (1, 0, 2)).reshape(Nn, B * L).astype(jnp.float32)
    out2 = pl.pallas_call(
        _layer_normalize_kernel,
        out_shape=jax.ShapeDtypeStruct((Nn, B * L), jnp.float32),
    )(x2)
    return jnp.transpose(out2.reshape(Nn, B, L), (1, 0, 2))


# ----------------------------------------------------------------------------
# Full Stacked_Filter_GNN forward.
# ----------------------------------------------------------------------------
def stacked_filter_gnn(x, lam, u, a_list, b_list, c_list, residual_alpha, *,
                       layers, batch_size, node_num, lag, use_bf16_matmul=False):
    """x: [N, F] (N = batch*node_num, F = lag); lam/u: [N, N]; a/b/c: [K]; alpha: [1].

    Returns the normalized output of shape [batch_size, node_num, lag].
    """
    # TODO(synk): edge_index / batch_L are passed through unchanged by the PyTorch
    # module (unused under plan='eig'); plan='inv' only prints a message — neither
    # is implemented here.
    x = x.astype(jnp.float32)
    lam = lam.astype(jnp.float32)
    u = u.astype(jnp.float32)
    a_list = a_list.astype(jnp.float32)
    b_list = b_list.astype(jnp.float32)
    c_list = c_list.astype(jnp.float32)
    residual_alpha = residual_alpha.astype(jnp.float32)

    N, F = x.shape
    assert N == batch_size * node_num and F == lag
    K = int(a_list.shape[0])

    # Lane-dense feature tiling: pad F to a multiple of 128 and pick the widest
    # tile (<=512) dividing the padded width. Padded columns are zero -> exact.
    F_pad = ((F + 127) // 128) * 128
    TF = 128
    for cand in (512, 256, 128):
        if F_pad % cand == 0:
            TF = cand
            break
    num_f_tiles = F_pad // TF
    x_pad = jnp.pad(x, ((0, 0), (0, F_pad - F))) if F_pad != F else x

    # Explicit scoped-VMEM budget (defaults are 16 MiB v5e / 32 MiB v6e,v7x).
    est = 4 * (4 * N * N        # Λ, U blocks (double-buffered)
               + 4 * N * TF     # x / out tiles (double-buffered)
               + 6 * N * N      # Λ², diag mask, filter_rep temporaries
               + 8 * N * TF)    # h, Uᵀx, acc, mid temporaries
    vmem_limit = int(min(100 * 1024 * 1024, max(32 * 1024 * 1024, 2 * est)))

    smem = pl.BlockSpec(memory_space=pltpu.MemorySpace.SMEM)
    kernel = _make_stacked_filter_kernel(K, layers, use_bf16_matmul)

    out_pad = pl.pallas_call(
        kernel,
        out_shape=jax.ShapeDtypeStruct((N, F_pad), jnp.float32),
        grid=(num_f_tiles,),
        in_specs=[
            smem,                                          # a_list   (SMEM scalars)
            smem,                                          # b_list
            smem,                                          # c_list
            smem,                                          # residual_alpha
            pl.BlockSpec((N, TF), lambda f: (0, f)),       # x feature tile
            pl.BlockSpec((N, N), lambda f: (0, 0)),        # Λ (whole matrix)
            pl.BlockSpec((N, N), lambda f: (0, 0)),        # U (whole matrix)
        ],
        out_specs=pl.BlockSpec((N, TF), lambda f: (0, f)),
        compiler_params=pltpu.CompilerParams(
            dimension_semantics=("parallel",),             # megacore over F tiles
            vmem_limit_bytes=vmem_limit),
    )(a_list, b_list, c_list, residual_alpha, x_pad, lam, u)

    out = out_pad[:, :F]
    return layer_normalize(out.reshape(batch_size, node_num, lag))


# ----------------------------------------------------------------------------
# Pure-JAX reference (mirrors the PyTorch forward exactly).
# ----------------------------------------------------------------------------
def _stacked_filter_ref(x, lam, u, a_list, b_list, c_list, residual_alpha):
    n = lam.shape[0]
    eye = jnp.eye(n, dtype=jnp.float32)
    out = None
    for i in range(int(a_list.shape[0])):
        a, b, c = a_list[i], b_list[i], c_list[i]
        fr = jnp.maximum((a * eye - lam) @ (lam - b * eye), 0.0)
        fi = ((c / ((a - b) * (a - b) / 4.0) * u) @ fr) @ u.T @ x
        out = residual_alpha[0] * x + fi if i == 0 else out + fi
    return out


def _layer_normalize_ref(batch_x):
    mn = jnp.min(jnp.min(batch_x, axis=0), axis=1, keepdims=True)   # (node_num, 1)
    mx = jnp.max(jnp.max(batch_x, axis=0), axis=1, keepdims=True)
    return (batch_x - mn[None]) / (mx[None] - mn[None] + 1e-8)


def stacked_filter_gnn_ref(x, lam, u, a_list, b_list, c_list, residual_alpha, *,
                           layers, batch_size, node_num, lag):
    h = x
    for _ in range(layers):
        h = _stacked_filter_ref(h, lam, u, a_list, b_list, c_list, residual_alpha)
    return _layer_normalize_ref(h.reshape(batch_size, node_num, lag))


if __name__ == "__main__":
    key = jax.random.PRNGKey(0)
    k_x, k_lam, k_u, k_a, k_b, k_c = jax.random.split(key, 6)

    # Small config consistent with the module: N = batch*node_num nodes, lag features.
    batch_size, node_num, lag = 2, 8, 32
    K, layers = 3, 2
    N, F = batch_size * node_num, lag

    x = jax.random.normal(k_x, (N, F), dtype=jnp.float32)

    # batch_Λ: diagonal eigenvalue matrix; batch_U: orthonormal eigenvectors.
    eigvals = jax.random.uniform(k_lam, (N,), dtype=jnp.float32, minval=0.0, maxval=2.0)
    lam = jnp.diag(eigvals)
    q, _ = jnp.linalg.qr(jax.random.normal(k_u, (N, N), dtype=jnp.float32))
    u = q.astype(jnp.float32)

    # a/b kept well separated so 1/((a-b)^2/4) stays moderate (demo numerics only;
    # the kernel handles any a,b exactly like the PyTorch module).
    a_list = jax.random.uniform(k_a, (K,), dtype=jnp.float32, minval=1.25, maxval=2.0)
    b_list = jax.random.uniform(k_b, (K,), dtype=jnp.float32, minval=0.0, maxval=0.75)
    c_list = jax.random.uniform(k_c, (K,), dtype=jnp.float32, minval=-1.0, maxval=1.0)
    residual_alpha = jnp.ones((1,), dtype=jnp.float32)

    out = stacked_filter_gnn(x, lam, u, a_list, b_list, c_list, residual_alpha,
                             layers=layers, batch_size=batch_size,
                             node_num=node_num, lag=lag)
    out = jax.block_until_ready(out)

    ref = stacked_filter_gnn_ref(x, lam, u, a_list, b_list, c_list, residual_alpha,
                                 layers=layers, batch_size=batch_size,
                                 node_num=node_num, lag=lag)

    assert out.shape == (batch_size, node_num, lag)
    err = float(jnp.max(jnp.abs(out - ref)))
    assert err <= 5e-3, f"mismatch vs reference: max abs err {err}"

    print("KERNEL_OK")
</pallas_src>

<mosaic_0001>
module attributes {stable_mosaic.version = 11 : i64} {
  func.func @kernel(%arg0: i32, %arg1: memref<3xf32, #tpu.memory_space<smem>>, %arg2: memref<3xf32, #tpu.memory_space<smem>>, %arg3: memref<3xf32, #tpu.memory_space<smem>>, %arg4: memref<1xf32, #tpu.memory_space<smem>>, %arg5: memref<16x128xf32, #tpu.memory_space<vmem>>, %arg6: memref<16x16xf32, #tpu.memory_space<vmem>>, %arg7: memref<16x16xf32, #tpu.memory_space<vmem>>, %arg8: memref<16x128xf32, #tpu.memory_space<vmem>>) attributes {dimension_semantics = [#tpu.dimension_semantics<parallel>], iteration_bounds = array<i64: 1>, scalar_prefetch = 0 : i64, scratch_operands = 0 : i64, tpu.core_type = #tpu.core_type<tc>, window_params = [{transform_indices = @transform_0, window_bounds = array<i64: 3>}, {transform_indices = @transform_1, window_bounds = array<i64: 3>}, {transform_indices = @transform_2, window_bounds = array<i64: 3>}, {transform_indices = @transform_3, window_bounds = array<i64: 1>}, {transform_indices = @transform_4, window_bounds = array<i64: 16, 128>}, {pipeline_mode = #tpu.pipeline_mode<synchronous>, transform_indices = @transform_5, window_bounds = array<i64: 16, 16>}, {pipeline_mode = #tpu.pipeline_mode<synchronous>, transform_indices = @transform_6, window_bounds = array<i64: 16, 16>}, {transform_indices = @transform_7, window_bounds = array<i64: 16, 128>}]} {
    %c0 = arith.constant 0 : index
    %c0_0 = arith.constant 0 : index
    %0 = vector.load %arg6[%c0, %c0_0] : memref<16x16xf32, #tpu.memory_space<vmem>>, vector<16x16xf32>
    %c0_1 = arith.constant 0 : index
    %c0_2 = arith.constant 0 : index
    %1 = vector.load %arg7[%c0_1, %c0_2] : memref<16x16xf32, #tpu.memory_space<vmem>>, vector<16x16xf32>
    %2 = tpu.iota {dimensions = array<i32: 0>} : vector<16x16xi32>
    %3 = tpu.iota {dimensions = array<i32: 1>} : vector<16x16xi32>
    %4 = arith.cmpi eq, %2, %3 : vector<16x16xi32>
    %cst = arith.constant 1.000000e+00 : f32
    %cst_3 = arith.constant 0.000000e+00 : f32
    %5 = vector.broadcast %cst : f32 to vector<16x16xf32>
    %6 = vector.broadcast %cst_3 : f32 to vector<16x16xf32>
    %7 = arith.select %4, %5, %6 : vector<16x16xi1>, vector<16x16xf32>
    %cst_4 = arith.constant dense<0.000000e+00> : vector<16x16xf32>
    %8 = tpu.matmul %0, %0, %cst_4 {dimension_numbers = #tpu.dot_dimension_numbers<[1], [0], [0], [1], [0, 0, 1, 1], [], []>} : vector<16x16xf32>, vector<16x16xf32>, vector<16x16xf32> -> vector<16x16xf32>
    %c0_5 = arith.constant 0 : index
    %9 = memref.load %arg4[%c0_5] : memref<1xf32, #tpu.memory_space<smem>>
    %c0_6 = arith.constant 0 : index
    %c0_7 = arith.constant 0 : index
    %10 = vector.load %arg5[%c0_6, %c0_7] : memref<16x128xf32, #tpu.memory_space<vmem>>, vector<16x128xf32>
    %cst_8 = arith.constant dense<0.000000e+00> : vector<16x128xf32>
    %11 = tpu.matmul %1, %10, %cst_8 {dimension_numbers = #tpu.dot_dimension_numbers<[0], [0], [1], [1], [0, 1, 1, 1], [], []>} : vector<16x16xf32>, vector<16x128xf32>, vector<16x128xf32> -> vector<16x128xf32>
    %cst_9 = arith.constant 0.000000e+00 : f32
    %12 = vector.broadcast %cst_9 : f32 to vector<16x128xf32>
    %c0_10 = arith.constant 0 : index
    %13 = memref.load %arg1[%c0_10] : memref<3xf32, #tpu.memory_space<smem>>
    %c0_11 = arith.constant 0 : index
    %14 = memref.load %arg2[%c0_11] : memref<3xf32, #tpu.memory_space<smem>>
    %c0_12 = arith.constant 0 : index
    %15 = memref.load %arg3[%c0_12] : memref<3xf32, #tpu.memory_space<smem>>
    %16 = arith.subf %13, %14 : f32
    %17 = arith.subf %13, %14 : f32
    %18 = arith.mulf %16, %17 : f32
    %cst_13 = arith.constant 4.000000e+00 : f32
    %19 = arith.divf %18, %cst_13 : f32
    %20 = arith.divf %15, %19 : f32
    %21 = arith.addf %13, %14 : f32
    %22 = vector.broadcast %21 : f32 to vector<16x16xf32>
    %23 = arith.mulf %22, %0 : vector<16x16xf32>
    %24 = arith.subf %23, %8 : vector<16x16xf32>
    %25 = arith.mulf %13, %14 : f32
    %26 = vector.broadcast %25 : f32 to vector<16x16xf32>
    %27 = arith.mulf %26, %7 : vector<16x16xf32>
    %28 = arith.subf %24, %27 : vector<16x16xf32>
    %cst_14 = arith.constant 0.000000e+00 : f32
    %29 = vector.broadcast %cst_14 : f32 to vector<16x16xf32>
    %30 = arith.maximumf %28, %29 : vector<16x16xf32>
    %cst_15 = arith.constant dense<0.000000e+00> : vector<16x128xf32>
    %31 = tpu.matmul %30, %11, %cst_15 {dimension_numbers = #tpu.dot_dimension_numbers<[1], [0], [0], [1], [0, 0, 1, 1], [], []>} : vector<16x16xf32>, vector<16x128xf32>, vector<16x128xf32> -> vector<16x128xf32>
    %32 = vector.broadcast %20 : f32 to vector<16x128xf32>
    %33 = arith.mulf %32, %31 : vector<16x128xf32>
    %34 = arith.addf %12, %33 : vector<16x128xf32>
    %c1 = arith.constant 1 : index
    %35 = memref.load %arg1[%c1] : memref<3xf32, #tpu.memory_space<smem>>
    %c1_16 = arith.constant 1 : index
    %36 = memref.load %arg2[%c1_16] : memref<3xf32, #tpu.memory_space<smem>>
    %c1_17 = arith.constant 1 : index
    %37 = memref.load %arg3[%c1_17] : memref<3xf32, #tpu.memory_space<smem>>
    %38 = arith.subf %35, %36 : f32
    %39 = arith.subf %35, %36 : f32
    %40 = arith.mulf %38, %39 : f32
    %cst_18 = arith.constant 4.000000e+00 : f32
    %41 = arith.divf %40, %cst_18 : f32
    %42 = arith.divf %37, %41 : f32
    %43 = arith.addf %35, %36 : f32
    %44 = vector.broadcast %43 : f32 to vector<16x16xf32>
    %45 = arith.mulf %44, %0 : vector<16x16xf32>
    %46 = arith.subf %45, %8 : vector<16x16xf32>
    %47 = arith.mulf %35, %36 : f32
    %48 = vector.broadcast %47 : f32 to vector<16x16xf32>
    %49 = arith.mulf %48, %7 : vector<16x16xf32>
    %50 = arith.subf %46, %49 : vector<16x16xf32>
    %cst_19 = arith.constant 0.000000e+00 : f32
    %51 = vector.broadcast %cst_19 : f32 to vector<16x16xf32>
    %52 = arith.maximumf %50, %51 : vector<16x16xf32>
    %cst_20 = arith.constant dense<0.000000e+00> : vector<16x128xf32>
    %53 = tpu.matmul %52, %11, %cst_20 {dimension_numbers = #tpu.dot_dimension_numbers<[1], [0], [0], [1], [0, 0, 1, 1], [], []>} : vector<16x16xf32>, vector<16x128xf32>, vector<16x128xf32> -> vector<16x128xf32>
    %54 = vector.broadcast %42 : f32 to vector<16x128xf32>
    %55 = arith.mulf %54, %53 : vector<16x128xf32>
    %56 = arith.addf %34, %55 : vector<16x128xf32>
    %c2 = arith.constant 2 : index
    %57 = memref.load %arg1[%c2] : memref<3xf32, #tpu.memory_space<smem>>
    %c2_21 = arith.constant 2 : index
    %58 = memref.load %arg2[%c2_21] : memref<3xf32, #tpu.memory_space<smem>>
    %c2_22 = arith.constant 2 : index
    %59 = memref.load %arg3[%c2_22] : memref<3xf32, #tpu.memory_space<smem>>
    %60 = arith.subf %57, %58 : f32
    %61 = arith.subf %57, %58 : f32
    %62 = arith.mulf %60, %61 : f32
    %cst_23 = arith.constant 4.000000e+00 : f32
    %63 = arith.divf %62, %cst_23 : f32
    %64 = arith.divf %59, %63 : f32
    %65 = arith.addf %57, %58 : f32
    %66 = vector.broadcast %65 : f32 to vector<16x16xf32>
    %67 = arith.mulf %66, %0 : vector<16x16xf32>
    %68 = arith.subf %67, %8 : vector<16x16xf32>
    %69 = arith.mulf %57, %58 : f32
    %70 = vector.broadcast %69 : f32 to vector<16x16xf32>
    %71 = arith.mulf %70, %7 : vector<16x16xf32>
    %72 = arith.subf %68, %71 : vector<16x16xf32>
    %cst_24 = arith.constant 0.000000e+00 : f32
    %73 = vector.broadcast %cst_24 : f32 to vector<16x16xf32>
    %74 = arith.maximumf %72, %73 : vector<16x16xf32>
    %cst_25 = arith.constant dense<0.000000e+00> : vector<16x128xf32>
    %75 = tpu.matmul %74, %11, %cst_25 {dimension_numbers = #tpu.dot_dimension_numbers<[1], [0], [0], [1], [0, 0, 1, 1], [], []>} : vector<16x16xf32>, vector<16x128xf32>, vector<16x128xf32> -> vector<16x128xf32>
    %76 = vector.broadcast %64 : f32 to vector<16x128xf32>
    %77 = arith.mulf %76, %75 : vector<16x128xf32>
    %78 = arith.addf %56, %77 : vector<16x128xf32>
    %79 = vector.broadcast %9 : f32 to vector<16x128xf32>
    %80 = arith.mulf %79, %10 : vector<16x128xf32>
    %cst_26 = arith.constant dense<0.000000e+00> : vector<16x128xf32>
    %81 = tpu.matmul %1, %78, %cst_26 {dimension_numbers = #tpu.dot_dimension_numbers<[1], [0], [0], [1], [0, 0, 1, 1], [], []>} : vector<16x16xf32>, vector<16x128xf32>, vector<16x128xf32> -> vector<16x128xf32>
    %82 = arith.addf %80, %81 : vector<16x128xf32>
    %cst_27 = arith.constant dense<0.000000e+00> : vector<16x128xf32>
    %83 = tpu.matmul %1, %82, %cst_27 {dimension_numbers = #tpu.dot_dimension_numbers<[0], [0], [1], [1], [0, 1, 1, 1], [], []>} : vector<16x16xf32>, vector<16x128xf32>, vector<16x128xf32> -> vector<16x128xf32>
    %cst_28 = arith.constant 0.000000e+00 : f32
    %84 = vector.broadcast %cst_28 : f32 to vector<16x128xf32>
    %c0_29 = arith.constant 0 : index
    %85 = memref.load %arg1[%c0_29] : memref<3xf32, #tpu.memory_space<smem>>
    %c0_30 = arith.constant 0 : index
    %86 = memref.load %arg2[%c0_30] : memref<3xf32, #tpu.memory_space<smem>>
    %c0_31 = arith.constant 0 : index
    %87 = memref.load %arg3[%c0_31] : memref<3xf32, #tpu.memory_space<smem>>
    %88 = arith.subf %85, %86 : f32
    %89 = arith.subf %85, %86 : f32
    %90 = arith.mulf %88, %89 : f32
    %cst_32 = arith.constant 4.000000e+00 : f32
    %91 = arith.divf %90, %cst_32 : f32
    %92 = arith.divf %87, %91 : f32
    %93 = arith.addf %85, %86 : f32
    %94 = vector.broadcast %93 : f32 to vector<16x16xf32>
    %95 = arith.mulf %94, %0 : vector<16x16xf32>
    %96 = arith.subf %95, %8 : vector<16x16xf32>
    %97 = arith.mulf %85, %86 : f32
    %98 = vector.broadcast %97 : f32 to vector<16x16xf32>
    %99 = arith.mulf %98, %7 : vector<16x16xf32>
    %100 = arith.subf %96, %99 : vector<16x16xf32>
    %cst_33 = arith.constant 0.000000e+00 : f32
    %101 = vector.broadcast %cst_33 : f32 to vector<16x16xf32>
    %102 = arith.maximumf %100, %101 : vector<16x16xf32>
    %cst_34 = arith.constant dense<0.000000e+00> : vector<16x128xf32>
    %103 = tpu.matmul %102, %83, %cst_34 {dimension_numbers = #tpu.dot_dimension_numbers<[1], [0], [0], [1], [0, 0, 1, 1], [], []>} : vector<16x16xf32>, vector<16x128xf32>, vector<16x128xf32> -> vector<16x128xf32>
    %104 = vector.broadcast %92 : f32 to vector<16x128xf32>
    %105 = arith.mulf %104, %103 : vector<16x128xf32>
    %106 = arith.addf %84, %105 : vector<16x128xf32>
    %c1_35 = arith.constant 1 : index
    %107 = memref.load %arg1[%c1_35] : memref<3xf32, #tpu.memory_space<smem>>
    %c1_36 = arith.constant 1 : index
    %108 = memref.load %arg2[%c1_36] : memref<3xf32, #tpu.memory_space<smem>>
    %c1_37 = arith.constant 1 : index
    %109 = memref.load %arg3[%c1_37] : memref<3xf32, #tpu.memory_space<smem>>
    %110 = arith.subf %107, %108 : f32
    %111 = arith.subf %107, %108 : f32
    %112 = arith.mulf %110, %111 : f32
    %cst_38 = arith.constant 4.000000e+00 : f32
    %113 = arith.divf %112, %cst_38 : f32
    %114 = arith.divf %109, %113 : f32
    %115 = arith.addf %107, %108 : f32
    %116 = vector.broadcast %115 : f32 to vector<16x16xf32>
    %117 = arith.mulf %116, %0 : vector<16x16xf32>
    %118 = arith.subf %117, %8 : vector<16x16xf32>
    %119 = arith.mulf %107, %108 : f32
    %120 = vector.broadcast %119 : f32 to vector<16x16xf32>
    %121 = arith.mulf %120, %7 : vector<16x16xf32>
    %122 = arith.subf %118, %121 : vector<16x16xf32>
    %cst_39 = arith.constant 0.000000e+00 : f32
    %123 = vector.broadcast %cst_39 : f32 to vector<16x16xf32>
    %124 = arith.maximumf %122, %123 : vector<16x16xf32>
    %cst_40 = arith.constant dense<0.000000e+00> : vector<16x128xf32>
    %125 = tpu.matmul %124, %83, %cst_40 {dimension_numbers = #tpu.dot_dimension_numbers<[1], [0], [0], [1], [0, 0, 1, 1], [], []>} : vector<16x16xf32>, vector<16x128xf32>, vector<16x128xf32> -> vector<16x128xf32>
    %126 = vector.broadcast %114 : f32 to vector<16x128xf32>
    %127 = arith.mulf %126, %125 : vector<16x128xf32>
    %128 = arith.addf %106, %127 : vector<16x128xf32>
    %c2_41 = arith.constant 2 : index
    %129 = memref.load %arg1[%c2_41] : memref<3xf32, #tpu.memory_space<smem>>
    %c2_42 = arith.constant 2 : index
    %130 = memref.load %arg2[%c2_42] : memref<3xf32, #tpu.memory_space<smem>>
    %c2_43 = arith.constant 2 : index
    %131 = memref.load %arg3[%c2_43] : memref<3xf32, #tpu.memory_space<smem>>
    %132 = arith.subf %129, %130 : f32
    %133 = arith.subf %129, %130 : f32
    %134 = arith.mulf %132, %133 : f32
    %cst_44 = arith.constant 4.000000e+00 : f32
    %135 = arith.divf %134, %cst_44 : f32
    %136 = arith.divf %131, %135 : f32
    %137 = arith.addf %129, %130 : f32
    %138 = vector.broadcast %137 : f32 to vector<16x16xf32>
    %139 = arith.mulf %138, %0 : vector<16x16xf32>
    %140 = arith.subf %139, %8 : vector<16x16xf32>
    %141 = arith.mulf %129, %130 : f32
    %142 = vector.broadcast %141 : f32 to vector<16x16xf32>
    %143 = arith.mulf %142, %7 : vector<16x16xf32>
    %144 = arith.subf %140, %143 : vector<16x16xf32>
    %cst_45 = arith.constant 0.000000e+00 : f32
    %145 = vector.broadcast %cst_45 : f32 to vector<16x16xf32>
    %146 = arith.maximumf %144, %145 : vector<16x16xf32>
    %cst_46 = arith.constant dense<0.000000e+00> : vector<16x128xf32>
    %147 = tpu.matmul %146, %83, %cst_46 {dimension_numbers = #tpu.dot_dimension_numbers<[1], [0], [0], [1], [0, 0, 1, 1], [], []>} : vector<16x16xf32>, vector<16x128xf32>, vector<16x128xf32> -> vector<16x128xf32>
    %148 = vector.broadcast %136 : f32 to vector<16x128xf32>
    %149 = arith.mulf %148, %147 : vector<16x128xf32>
    %150 = arith.addf %128, %149 : vector<16x128xf32>
    %151 = vector.broadcast %9 : f32 to vector<16x128xf32>
    %152 = arith.mulf %151, %82 : vector<16x128xf32>
    %cst_47 = arith.constant dense<0.000000e+00> : vector<16x128xf32>
    %153 = tpu.matmul %1, %150, %cst_47 {dimension_numbers = #tpu.dot_dimension_numbers<[1], [0], [0], [1], [0, 0, 1, 1], [], []>} : vector<16x16xf32>, vector<16x128xf32>, vector<16x128xf32> -> vector<16x128xf32>
    %154 = arith.addf %152, %153 : vector<16x128xf32>
    %c0_48 = arith.constant 0 : index
    %c0_49 = arith.constant 0 : index
    %155 = vector.load %arg8[%c0_48, %c0_49] : memref<16x128xf32, #tpu.memory_space<vmem>>, vector<16x128xf32>
    tpu.vector_store %arg8[%c0_48, %c0_49], %154 {strides = array<i32>} : memref<16x128xf32, #tpu.memory_space<vmem>>, vector<16x128xf32>,
    return
  }
  func.func @transform_0(%arg0: i32) -> i32 {
    %c0_i32 = arith.constant 0 : i32
    %c0_i32_0 = arith.constant 0 : i32
    return %c0_i32 : i32
  }
  func.func @transform_1(%arg0: i32) -> i32 {
    %c0_i32 = arith.constant 0 : i32
    %c0_i32_0 = arith.constant 0 : i32
    return %c0_i32 : i32
  }
  func.func @transform_2(%arg0: i32) -> i32 {
    %c0_i32 = arith.constant 0 : i32
    %c0_i32_0 = arith.constant 0 : i32
    return %c0_i32 : i32
  }
  func.func @transform_3(%arg0: i32) -> i32 {
    %c0_i32 = arith.constant 0 : i32
    %c0_i32_0 = arith.constant 0 : i32
    return %c0_i32 : i32
  }
  func.func @transform_4(%arg0: i32) -> (i32, i32) {
    %c0_i32 = arith.constant 0 : i32
    %c0_i32_0 = arith.constant 0 : i32
    return %c0_i32, %arg0 : i32, i32
  }
  func.func @transform_5(%arg0: i32) -> (i32, i32) {
    %c0_i32 = arith.constant 0 : i32
    %c0_i32_0 = arith.constant 0 : i32
    %c0_i32_1 = arith.constant 0 : i32
    return %c0_i32, %c0_i32_0 : i32, i32
  }
  func.func @transform_6(%arg0: i32) -> (i32, i32) {
    %c0_i32 = arith.constant 0 : i32
    %c0_i32_0 = arith.constant 0 : i32
    %c0_i32_1 = arith.constant 0 : i32
    return %c0_i32, %c0_i32_0 : i32, i32
  }
  func.func @transform_7(%arg0: i32) -> (i32, i32) {
    %c0_i32 = arith.constant 0 : i32
    %c0_i32_0 = arith.constant 0 : i32
    return %c0_i32, %arg0 : i32, i32
  }
}

</mosaic_0001>

<llo_original>
// kernel: tpu_custom_call.1
$region0: #{tpu_custom_call.1}
  #allocation0 [shape = 'u32[]', space=smem, size = 0x4, offset = 0x4, fixed_abs, tag = 'smem constant byte address 0x4 - core index']
  #allocation1 [shape = 'u32[72,128]{1,0:T(1,128)}', space=vmem, size = 0x9000, scoped, tag = 'internal scratch']
  #allocation2 [shape = 'f32[1]{0:T(128)S(6)}', space=smem, size = 0x200, scoped, tag = 'scoped memory for tpu_custom_call.1']
  %s0 = inlined_call_operand.vmem [shape: f32[3], index: 0, kind: input, shape index: {}]
  %s1 = inlined_call_operand.vmem [shape: f32[3], index: 1, kind: input, shape index: {}]
  %s2 = inlined_call_operand.vmem [shape: f32[3], index: 2, kind: input, shape index: {}]
  %s3 = inlined_call_operand.<no memory space> [shape: f32[1], index: 3, kind: input, shape index: {}]
  %s4 = inlined_call_operand.hbm [shape: f32[16,128], index: 4, kind: input, shape index: {}]
  %s5 = inlined_call_operand.hbm [shape: f32[16,16], index: 5, kind: input, shape index: {}]
  %s6 = inlined_call_operand.hbm [shape: f32[16,16], index: 6, kind: input, shape index: {}]
  %s7 = inlined_call_operand.hbm [shape: f32[16,128], index: 7, kind: output, shape index: {}]
  %s8 = sld [smem:[#allocation0]]
  $region62: #{tpu_custom_call.1} parent=0
    _
  %s10 = ssub.s32 1, %s8
  %s11 = scalar_select 0, %s10, %s8
  %12 = sst [smem:[#allocation2]] %s3
  $region1: #{tpu_custom_call.1} parent=0
    #allocation3 [shape = 'u8[512]{0}', space=smem, size = 0x200, scoped, tag = 'input window, operand 0, single buffered']
    #allocation4 [shape = 's32[1]{0}', space=sflag, size = 0x4, scoped, tag = 'scoped memory for tpu_custom_call.1']
    #allocation5 [shape = 's32[1]{0}', space=sflag, size = 0x4, scoped, tag = 'scoped memory for tpu_custom_call.1']
    #allocation6 [shape = 's32[1]{0}', space=sflag, size = 0x4, scoped, tag = 'scoped memory for tpu_custom_call.1']
    #allocation7 [shape = 'u8[512]{0}', space=smem, size = 0x200, scoped, tag = 'input window, operand 1, single buffered']
    #allocation8 [shape = 's32[1]{0}', space=sflag, size = 0x4, scoped, tag = 'scoped memory for tpu_custom_call.1']
    #allocation9 [shape = 'u8[512]{0}', space=smem, size = 0x200, scoped, tag = 'input window, operand 2, single buffered']
    #allocation10 [shape = 'u8[8192]{0}', space=vmem, size = 0x2000, scoped, tag = 'input window, operand 4, single buffered']
    #allocation11 [shape = 'u8[8192]{0}', space=vmem, size = 0x2000, scoped, tag = 'input window, operand 5, single buffered']
    #allocation12 [shape = 's32[1]{0}', space=sflag, size = 0x4, scoped, tag = 'scoped memory for tpu_custom_call.1']
    #allocation13 [shape = 'u8[8192]{0}', space=vmem, size = 0x2000, scoped, tag = 'input window, operand 6, single buffered']
    #allocation14 [shape = 'u8[8192]{0}', space=vmem, size = 0x2000, scoped, tag = 'output window, operand 0, single buffered']
    %13 = vsyncpa [#allocation6], 0
    %14 = vsyncpa [#allocation8], 0
    %15 = vsyncpa [#allocation4], 0
    %16 = vsyncpa [#allocation12], 0
    %17 = vsyncpa [#allocation5], 0
    // Predicated region
    $region2: #{tpu_custom_call.1} parent=1 // pred_check
      _
    $region3: #{tpu_custom_call.1} parent=1 // pred_check_branch
      %19 = sbr.rel (0) target = $region5
    $region4: #{tpu_custom_call.1} parent=1 // pred_region
      %21 = vsyncadd [#allocation6], 0
      %s23 = sshll.u32 %s0, 4
      %s24 = int_to_ptr.vmem [resolvable:$true] %s23
      %26 = dma.vmem_to_smem %s24, 16, [#allocation3], [#allocation6]
    $region5: #{tpu_custom_call.1} parent=1 // pred_fallthru
      _
    // Predicated region
    $region6: #{tpu_custom_call.1} parent=1 // pred_check
      _
    $region7: #{tpu_custom_call.1} parent=1 // pred_check_branch
      %28 = sbr.rel (0) target = $region9
    $region8: #{tpu_custom_call.1} parent=1 // pred_region
      %30 = vsyncadd [#allocation8], 0
      %s32 = sshll.u32 %s1, 4
      %s33 = int_to_ptr.vmem [resolvable:$true] %s32
      %35 = dma.vmem_to_smem %s33, 16, [#allocation7], [#allocation8]
    $region9: #{tpu_custom_call.1} parent=1 // pred_fallthru
      _
    // Predicated region
    $region10: #{tpu_custom_call.1} parent=1 // pred_check
      _
    $region11: #{tpu_custom_call.1} parent=1 // pred_check_branch
      %37 = sbr.rel (0) target = $region13
    $region12: #{tpu_custom_call.1} parent=1 // pred_region
      %39 = vsyncadd [#allocation8], 0
      %s41 = sshll.u32 %s2, 4
      %s42 = int_to_ptr.vmem [resolvable:$true] %s41
      %44 = dma.vmem_to_smem %s42, 16, [#allocation9], [#allocation8]
    $region13: #{tpu_custom_call.1} parent=1 // pred_fallthru
      _
    // Predicated region
    $region14: #{tpu_custom_call.1} parent=1 // pred_check
      _
    $region15: #{tpu_custom_call.1} parent=1 // pred_check_branch
      %46 = sbr.rel (0) target = $region17
    $region16: #{tpu_custom_call.1} parent=1 // pred_region
      _
    $region17: #{tpu_custom_call.1} parent=1 // pred_fallthru
      _
    // Predicated region
    $region18: #{tpu_custom_call.1} parent=1 // pred_check
      _
    $region19: #{tpu_custom_call.1} parent=1 // pred_check_branch
      %48 = sbr.rel (0) target = $region21
    $region20: #{tpu_custom_call.1} parent=1 // pred_region
      %50 = vsyncadd [#allocation4], 0
      %s51 = sshll.u32 %s4, 4
      %s52 = int_to_ptr.hbm [resolvable:$true] %s51
      %s53 = sshll.u32 [#allocation10], 4
      %s54 = int_to_ptr.vmem [resolvable:$true] %s53
      %59 = dma.hbm_to_vmem [thread:$0]  %s52, 256, %s54, [#allocation4], 128, 128, 8
    $region21: #{tpu_custom_call.1} parent=1 // pred_fallthru
      _
    // Predicated region
    $region22: #{tpu_custom_call.1} parent=1 // pred_check
      _
    $region23: #{tpu_custom_call.1} parent=1 // pred_check_branch
      %61 = sbr.rel (0) target = $region25
    $region24: #{tpu_custom_call.1} parent=1 // pred_region
      %63 = vsyncadd [#allocation12], 0
      %s64 = sshll.u32 %s5, 4
      %s65 = int_to_ptr.hbm [resolvable:$true] %s64
      %s66 = sshll.u32 [#allocation11], 4
      %s67 = int_to_ptr.vmem [resolvable:$true] %s66
      %72 = dma.hbm_to_vmem [thread:$0]  %s65, 256, %s67, [#allocation12], 128, 128, 8
    $region25: #{tpu_custom_call.1} parent=1 // pred_fallthru
      _
    // Predicated region
    $region26: #{tpu_custom_call.1} parent=1 // pred_check
      _
    $region27: #{tpu_custom_call.1} parent=1 // pred_check_branch
      %74 = sbr.rel (0) target = $region29
    $region28: #{tpu_custom_call.1} parent=1 // pred_region
      %76 = vsyncadd [#allocation12], 0
      %s77 = sshll.u32 %s6, 4
      %s78 = int_to_ptr.hbm [resolvable:$true] %s77
      %s79 = sshll.u32 [#allocation13], 4
      %s80 = int_to_ptr.vmem [resolvable:$true] %s79
      %85 = dma.hbm_to_vmem [thread:$0]  %s78, 256, %s80, [#allocation12], 128, 128, 8
    $region29: #{tpu_custom_call.1} parent=1 // pred_fallthru
      _
    // Predicated region
    $region30: #{tpu_custom_call.1} parent=1 // pred_check
      _
    $region31: #{tpu_custom_call.1} parent=1 // pred_check_branch
      %87 = sbr.rel (0) target = $region33
    $region32: #{tpu_custom_call.1} parent=1 // pred_region
      %89 = dma.done [#allocation6], 16
    $region33: #{tpu_custom_call.1} parent=1 // pred_fallthru
      _
    // Predicated region
    $region34: #{tpu_custom_call.1} parent=1 // pred_check
      _
    $region35: #{tpu_custom_call.1} parent=1 // pred_check_branch
      %91 = sbr.rel (0) target = $region37
    $region36: #{tpu_custom_call.1} parent=1 // pred_region
      %93 = dma.done [#allocation8], 16
    $region37: #{tpu_custom_call.1} parent=1 // pred_fallthru
      _
    // Predicated region
    $region38: #{tpu_custom_call.1} parent=1 // pred_check
      _
    $region39: #{tpu_custom_call.1} parent=1 // pred_check_branch
      %95 = sbr.rel (0) target = $region41
    $region40: #{tpu_custom_call.1} parent=1 // pred_region
      %97 = dma.done [#allocation8], 16
    $region41: #{tpu_custom_call.1} parent=1 // pred_fallthru
      _
    // Predicated region
    $region42: #{tpu_custom_call.1} parent=1 // pred_check
      _
    $region43: #{tpu_custom_call.1} parent=1 // pred_check_branch
      %99 = sbr.rel (0) target = $region45
    $region44: #{tpu_custom_call.1} parent=1 // pred_region
      %101 = dma.done [#allocation4], 256
    $region45: #{tpu_custom_call.1} parent=1 // pred_fallthru
      _
    // Predicated region
    $region46: #{tpu_custom_call.1} parent=1 // pred_check
      _
    $region47: #{tpu_custom_call.1} parent=1 // pred_check_branch
      %103 = sbr.rel (0) target = $region49
    $region48: #{tpu_custom_call.1} parent=1 // pred_region
      %105 = dma.done [#allocation12], 256
    $region49: #{tpu_custom_call.1} parent=1 // pred_fallthru
      _
    // Predicated region
    $region50: #{tpu_custom_call.1} parent=1 // pred_check
      _
    $region51: #{tpu_custom_call.1} parent=1 // pred_check_branch
      %107 = sbr.rel (0) target = $region53
    $region52: #{tpu_custom_call.1} parent=1 // pred_region
      %109 = dma.done [#allocation12], 256
    $region53: #{tpu_custom_call.1} parent=1 // pred_fallthru
      _
    %110 = sfence
    %v111 = vld [vmem:[#allocation11] sm:$0xff]
    %v112 = vld [vmem:[#allocation11 + $0x8] sm:$0xff]
    %v113 = vld [vmem:[#allocation13] sm:$0xff]
    %v114 = vld [vmem:[#allocation13 + $0x8] sm:$0xff]
    %v115 = vlaneseq
    %v116 = vshrl.u32 %v115, 7
    %v117 = vadd.s32 %v116, 8
    %v118 = vlaneseq
    %v119 = vand.u32 %v118, 127
    %vm120 = vcmp.eq.s32.totalorder %v116, %v119
    %vm121 = vcmp.eq.s32.totalorder %v117, %v119
    %v122 = vsel %vm120, 1.0, 0.0
    %v123 = vsel %vm121, 1.0, 0.0
    %vm124 = vcmask 130048
    %v126 = vsel %vm124, %v111, 0
    %v129 = vsel %vm124, %v112, 0
    %131 = vmatpush.msra.mxu0 0.0
    %132 = vmatpush.msra.mxu0 0.0
    %133 = vmatpush.msra.mxu0 0.0
    %134 = vmatpush.msra.mxu0 0.0
    %135 = vmatpush.msra.mxu0 0.0
    %136 = vmatpush.msra.mxu0 0.0
    %137 = vmatpush.msra.mxu0 0.0
    %138 = vmatpush.msra.mxu0 0.0
    %139 = vmatpush.msra.mxu0 0.0
    %140 = vmatpush.msra.mxu0 0.0
    %141 = vmatpush.msra.mxu0 0.0
    %142 = vmatpush.msra.mxu0 0.0
    %143 = vmatpush.msra.mxu0 0.0
    %144 = vmatpush.msra.mxu0 0.0
    %145 = vmatpush.msra.mxu0 %v112
    %146 = vmatpush.msra.mxu0 %v111
    %147 = vmatmul.f32.gmra.mxu0 %v126
    %v148 = vpop.f32.mrf.mxu0
    %v149 = vadd.f32 0.0, %v148
    %150 = vmatmul.f32.gmra.mxu0 %v129
    %v151 = vpop.f32.mrf.mxu0
    %v152 = vadd.f32 0.0, %v151
    %153 = vdwg.mxu0
    %s154 = sld [smem:[#allocation2]]
    %v155 = vld [vmem:[#allocation10] sm:$0xff]
    %v156 = vld [vmem:[#allocation10 + $0x8] sm:$0xff]
    %157 = vxpose.xlu0.b32.start [1/16] %v113, 128
    %158 = vxpose.xlu0.b32.cont [2/16] %v114, 128
    %159 = vxpose.xlu0.b32.cont [3/16] 0.0, 128
    %160 = vxpose.xlu0.b32.cont [4/16] 0.0, 128
    %161 = vxpose.xlu0.b32.cont [5/16] 0.0, 128
    %162 = vxpose.xlu0.b32.cont [6/16] 0.0, 128
    %163 = vxpose.xlu0.b32.cont [7/16] 0.0, 128
    %164 = vxpose.xlu0.b32.cont [8/16] 0.0, 128
    %165 = vxpose.xlu0.b32.cont [9/16] 0.0, 128
    %166 = vxpose.xlu0.b32.cont [10/16] 0.0, 128
    %167 = vxpose.xlu0.b32.cont [11/16] 0.0, 128
    %168 = vxpose.xlu0.b32.cont [12/16] 0.0, 128
    %169 = vxpose.xlu0.b32.cont [13/16] 0.0, 128
    %170 = vxpose.xlu0.b32.cont [14/16] 0.0, 128
    %171 = vxpose.xlu0.b32.cont [15/16] 0.0, 128
    %172 = vxpose.xlu0.b32.end [16/16] 0.0, 128
    %v173 = vpop.trf.xlu0
    %v174 = vpop.trf.xlu0
    %v175 = vpop.trf.xlu0
    %v176 = vpop.trf.xlu0
    %v177 = vpop.trf.xlu0
    %v178 = vpop.trf.xlu0
    %v179 = vpop.trf.xlu0
    %v180 = vpop.trf.xlu0
    %v181 = vpop.trf.xlu0
    %v182 = vpop.trf.xlu0
    %v183 = vpop.trf.xlu0
    %v184 = vpop.trf.xlu0
    %v185 = vpop.trf.xlu0
    %v186 = vpop.trf.xlu0
    %v187 = vpop.trf.xlu0
    %v188 = vpop.trf.xlu0
    %v190 = vsel %vm124, %v173, 0
    %v193 = vsel %vm124, %v174, 0
    %195 = vmatpush.msra.mxu0 0.0
    %196 = vmatpush.msra.mxu0 0.0
    %197 = vmatpush.msra.mxu0 0.0
    %198 = vmatpush.msra.mxu0 0.0
    %199 = vmatpush.msra.mxu0 0.0
    %200 = vmatpush.msra.mxu0 0.0
    %201 = vmatpush.msra.mxu0 0.0
    %202 = vmatpush.msra.mxu0 0.0
    %203 = vmatpush.msra.mxu0 0.0
    %204 = vmatpush.msra.mxu0 0.0
    %205 = vmatpush.msra.mxu0 0.0
    %206 = vmatpush.msra.mxu0 0.0
    %207 = vmatpush.msra.mxu0 0.0
    %208 = vmatpush.msra.mxu0 0.0
    %209 = vmatpush.msra.mxu0 %v156
    %210 = vmatpush.msra.mxu0 %v155
    %211 = vmatmul.f32.gmra.mxu0 %v190
    %v212 = vpop.f32.mrf.mxu0
    %v213 = vadd.f32 0.0, %v212
    %214 = vmatmul.f32.gmra.mxu0 %v193
    %v215 = vpop.f32.mrf.mxu0
    %v216 = vadd.f32 0.0, %v215
    %217 = vdwg.mxu0
    %s218 = sld [smem:[#allocation3]]
    %s219 = sld [smem:[#allocation7]]
    %s220 = sld [smem:[#allocation9]]
    %s221 = ssub.f32 %s218, %s219
    %s222 = smul.f32 %s221, %s221
    %v223 = vrcp.pop 4.0
    %v224 = vmul.f32 4.0, %v223
    %v225 = vsub.f32 1.0, %v224
    %v226 = vmul.f32 %v223, %v225
    %v227 = vadd.f32 %v223, %v226
    %vm228 = vweird.f32 %v223
    %v229 = vsel %vm228, %v223, %v227
    %s230 = vtos %v229
    %s231 = smul.f32 %s222, %s230
    %v232 = vstv %s231
    %v233 = vrcp.pop %v232
    %v234 = vmul.f32 %v232, %v233
    %v235 = vsub.f32 1.0, %v234
    %v236 = vmul.f32 %v233, %v235
    %v237 = vadd.f32 %v233, %v236
    %vm238 = vweird.f32 %v232
    %vm239 = vweird.f32 %v233
    %vm240 = vmor %vm238, %vm239
    %v241 = vsel %vm240, %v233, %v237
    %v242 = vand.u32 2147483647, %v232
    %vm243 = vcmp.eq.f32.partialorder %v242, 8.507059e+37
    %v244 = vand.u32 %v232, 2147483648
    %v245 = vor.u32 1.1754944e-38, %v244
    %v246 = vsel %vm243, %v245, %v241
    %s247 = vtos %v246
    %s248 = smul.f32 %s220, %s247
    %s249 = sadd.f32 %s218, %s219
    %v250 = vstv %s249
    %v251 = vmul.f32 %v250, %v111
    %v252 = vmul.f32 %v250, %v112
    %v253 = vsub.f32 %v251, %v149
    %v254 = vsub.f32 %v252, %v152
    %s255 = smul.f32 %s218, %s219
    %v256 = vstv %s255
    %v257 = vmul.f32 %v256, %v122
    %v258 = vmul.f32 %v256, %v123
    %v259 = vsub.f32 %v253, %v257
    %v260 = vsub.f32 %v254, %v258
    %v261 = vmax.f32 %v259, 0.0
    %v262 = vmax.f32 %v260, 0.0
    %v264 = vsel %vm124, %v261, 0
    %v267 = vsel %vm124, %v262, 0
    %269 = vmatpush.msra.mxu0 0.0
    %270 = vmatpush.msra.mxu0 0.0
    %271 = vmatpush.msra.mxu0 0.0
    %272 = vmatpush.msra.mxu0 0.0
    %273 = vmatpush.msra.mxu0 0.0
    %274 = vmatpush.msra.mxu0 0.0
    %275 = vmatpush.msra.mxu0 0.0
    %276 = vmatpush.msra.mxu0 0.0
    %277 = vmatpush.msra.mxu0 0.0
    %278 = vmatpush.msra.mxu0 0.0
    %279 = vmatpush.msra.mxu0 0.0
    %280 = vmatpush.msra.mxu0 0.0
    %281 = vmatpush.msra.mxu0 0.0
    %282 = vmatpush.msra.mxu0 0.0
    %283 = vmatpush.msra.mxu0 %v216
    %284 = vmatpush.msra.mxu0 %v213
    %285 = vmatmul.f32.gmra.mxu0 %v264
    %v286 = vpop.f32.mrf.mxu0
    %v287 = vadd.f32 0.0, %v286
    %288 = vmatmul.f32.gmra.mxu0 %v267
    %v289 = vpop.f32.mrf.mxu0
    %v290 = vadd.f32 0.0, %v289
    %291 = vdwg.mxu0
    %v292 = vstv %s248
    %v293 = vmul.f32 %v292, %v287
    %v294 = vmul.f32 %v292, %v290
    %v295 = vadd.f32 %v293, 0.0
    %v296 = vadd.f32 %v294, 0.0
    %s297 = sld [smem:[#allocation3 + $0x1]]
    %s298 = sld [smem:[#allocation7 + $0x1]]
    %s299 = sld [smem:[#allocation9 + $0x1]]
    %s300 = ssub.f32 %s297, %s298
    %s301 = smul.f32 %s300, %s300
    %v302 = vrcp.pop 4.0
    %v303 = vmul.f32 4.0, %v302
    %v304 = vsub.f32 1.0, %v303
    %v305 = vmul.f32 %v302, %v304
    %v306 = vadd.f32 %v302, %v305
    %vm307 = vweird.f32 %v302
    %v308 = vsel %vm307, %v302, %v306
    %s309 = vtos %v308
    %s310 = smul.f32 %s301, %s309
    %v311 = vstv %s310
    %v312 = vrcp.pop %v311
    %v313 = vmul.f32 %v311, %v312
    %v314 = vsub.f32 1.0, %v313
    %v315 = vmul.f32 %v312, %v314
    %v316 = vadd.f32 %v312, %v315
    %vm317 = vweird.f32 %v311
    %vm318 = vweird.f32 %v312
    %vm319 = vmor %vm317, %vm318
    %v320 = vsel %vm319, %v312, %v316
    %v321 = vand.u32 2147483647, %v311
    %vm322 = vcmp.eq.f32.partialorder %v321, 8.507059e+37
    %v323 = vand.u32 %v311, 2147483648
    %v324 = vor.u32 1.1754944e-38, %v323
    %v325 = vsel %vm322, %v324, %v320
    %s326 = vtos %v325
    %s327 = smul.f32 %s299, %s326
    %s328 = sadd.f32 %s297, %s298
    %v329 = vstv %s328
    %v330 = vmul.f32 %v329, %v111
    %v331 = vmul.f32 %v329, %v112
    %v332 = vsub.f32 %v330, %v149
    %v333 = vsub.f32 %v331, %v152
    %s334 = smul.f32 %s297, %s298
    %v335 = vstv %s334
    %v336 = vmul.f32 %v335, %v122
    %v337 = vmul.f32 %v335, %v123
    %v338 = vsub.f32 %v332, %v336
    %v339 = vsub.f32 %v333, %v337
    %v340 = vmax.f32 %v338, 0.0
    %v341 = vmax.f32 %v339, 0.0
    %v343 = vsel %vm124, %v340, 0
    %v346 = vsel %vm124, %v341, 0
    %348 = vmatpush.msra.mxu0 0.0
    %349 = vmatpush.msra.mxu0 0.0
    %350 = vmatpush.msra.mxu0 0.0
    %351 = vmatpush.msra.mxu0 0.0
    %352 = vmatpush.msra.mxu0 0.0
    %353 = vmatpush.msra.mxu0 0.0
    %354 = vmatpush.msra.mxu0 0.0
    %355 = vmatpush.msra.mxu0 0.0
    %356 = vmatpush.msra.mxu0 0.0
    %357 = vmatpush.msra.mxu0 0.0
    %358 = vmatpush.msra.mxu0 0.0
    %359 = vmatpush.msra.mxu0 0.0
    %360 = vmatpush.msra.mxu0 0.0
    %361 = vmatpush.msra.mxu0 0.0
    %362 = vmatpush.msra.mxu0 %v216
    %363 = vmatpush.msra.mxu0 %v213
    %364 = vmatmul.f32.gmra.mxu0 %v343
    %v365 = vpop.f32.mrf.mxu0
    %v366 = vadd.f32 0.0, %v365
    %367 = vmatmul.f32.gmra.mxu0 %v346
    %v368 = vpop.f32.mrf.mxu0
    %v369 = vadd.f32 0.0, %v368
    %370 = vdwg.mxu0
    %v371 = vstv %s327
    %v372 = vmul.f32 %v371, %v366
    %v373 = vmul.f32 %v371, %v369
    %v374 = vadd.f32 %v295, %v372
    %v375 = vadd.f32 %v296, %v373
    %s376 = sld [smem:[#allocation3 + $0x2]]
    %s377 = sld [smem:[#allocation7 + $0x2]]
    %s378 = sld [smem:[#allocation9 + $0x2]]
    %s379 = ssub.f32 %s376, %s377
    %s380 = smul.f32 %s379, %s379
    %v381 = vrcp.pop 4.0
    %v382 = vmul.f32 4.0, %v381
    %v383 = vsub.f32 1.0, %v382
    %v384 = vmul.f32 %v381, %v383
    %v385 = vadd.f32 %v381, %v384
    %vm386 = vweird.f32 %v381
    %v387 = vsel %vm386, %v381, %v385
    %s388 = vtos %v387
    %s389 = smul.f32 %s380, %s388
    %v390 = vstv %s389
    %v391 = vrcp.pop %v390
    %v392 = vmul.f32 %v390, %v391
    %v393 = vsub.f32 1.0, %v392
    %v394 = vmul.f32 %v391, %v393
    %v395 = vadd.f32 %v391, %v394
    %vm396 = vweird.f32 %v390
    %vm397 = vweird.f32 %v391
    %vm398 = vmor %vm396, %vm397
    %v399 = vsel %vm398, %v391, %v395
    %v400 = vand.u32 2147483647, %v390
    %vm401 = vcmp.eq.f32.partialorder %v400, 8.507059e+37
    %v402 = vand.u32 %v390, 2147483648
    %v403 = vor.u32 1.1754944e-38, %v402
    %v404 = vsel %vm401, %v403, %v399
    %s405 = vtos %v404
    %s406 = smul.f32 %s378, %s405
    %s407 = sadd.f32 %s376, %s377
    %v408 = vstv %s407
    %v409 = vmul.f32 %v408, %v111
    %v410 = vmul.f32 %v408, %v112
    %v411 = vsub.f32 %v409, %v149
    %v412 = vsub.f32 %v410, %v152
    %s413 = smul.f32 %s376, %s377
    %v414 = vstv %s413
    %v415 = vmul.f32 %v414, %v122
    %v416 = vmul.f32 %v414, %v123
    %v417 = vsub.f32 %v411, %v415
    %v418 = vsub.f32 %v412, %v416
    %v419 = vmax.f32 %v417, 0.0
    %v420 = vmax.f32 %v418, 0.0
    %v422 = vsel %vm124, %v419, 0
    %v425 = vsel %vm124, %v420, 0
    %427 = vmatpush.msra.mxu0 0.0
    %428 = vmatpush.msra.mxu0 0.0
    %429 = vmatpush.msra.mxu0 0.0
    %430 = vmatpush.msra.mxu0 0.0
    %431 = vmatpush.msra.mxu0 0.0
    %432 = vmatpush.msra.mxu0 0.0
    %433 = vmatpush.msra.mxu0 0.0
    %434 = vmatpush.msra.mxu0 0.0
    %435 = vmatpush.msra.mxu0 0.0
    %436 = vmatpush.msra.mxu0 0.0
    %437 = vmatpush.msra.mxu0 0.0
    %438 = vmatpush.msra.mxu0 0.0
    %439 = vmatpush.msra.mxu0 0.0
    %440 = vmatpush.msra.mxu0 0.0
    %441 = vmatpush.msra.mxu0 %v216
    %442 = vmatpush.msra.mxu0 %v213
    %443 = vmatmul.f32.gmra.mxu0 %v422
    %v444 = vpop.f32.mrf.mxu0
    %v445 = vadd.f32 0.0, %v444
    %446 = vmatmul.f32.gmra.mxu0 %v425
    %v447 = vpop.f32.mrf.mxu0
    %v448 = vadd.f32 0.0, %v447
    %449 = vdwg.mxu0
    %v450 = vstv %s406
    %v451 = vmul.f32 %v450, %v445
    %v452 = vmul.f32 %v450, %v448
    %v453 = vadd.f32 %v374, %v451
    %v454 = vadd.f32 %v375, %v452
    %v455 = vstv %s154
    %v456 = vmul.f32 %v455, %v155
    %v457 = vmul.f32 %v455, %v156
    %v459 = vsel %vm124, %v113, 0
    %v462 = vsel %vm124, %v114, 0
    %464 = vmatpush.msra.mxu0 0.0
    %465 = vmatpush.msra.mxu0 0.0
    %466 = vmatpush.msra.mxu0 0.0
    %467 = vmatpush.msra.mxu0 0.0
    %468 = vmatpush.msra.mxu0 0.0
    %469 = vmatpush.msra.mxu0 0.0
    %470 = vmatpush.msra.mxu0 0.0
    %471 = vmatpush.msra.mxu0 0.0
    %472 = vmatpush.msra.mxu0 0.0
    %473 = vmatpush.msra.mxu0 0.0
    %474 = vmatpush.msra.mxu0 0.0
    %475 = vmatpush.msra.mxu0 0.0
    %476 = vmatpush.msra.mxu0 0.0
    %477 = vmatpush.msra.mxu0 0.0
    %478 = vmatpush.msra.mxu0 %v454
    %479 = vmatpush.msra.mxu0 %v453
    %480 = vmatmul.f32.gmra.mxu0 %v459
    %v481 = vpop.f32.mrf.mxu0
    %v482 = vadd.f32 0.0, %v481
    %483 = vmatmul.f32.gmra.mxu0 %v462
    %v484 = vpop.f32.mrf.mxu0
    %v485 = vadd.f32 0.0, %v484
    %486 = vdwg.mxu0
    %v487 = vadd.f32 %v456, %v482
    %v488 = vadd.f32 %v457, %v485
    %489 = vmatpush.msra.mxu0 0.0
    %490 = vmatpush.msra.mxu0 0.0
    %491 = vmatpush.msra.mxu0 0.0
    %492 = vmatpush.msra.mxu0 0.0
    %493 = vmatpush.msra.mxu0 0.0
    %494 = vmatpush.msra.mxu0 0.0
    %495 = vmatpush.msra.mxu0 0.0
    %496 = vmatpush.msra.mxu0 0.0
    %497 = vmatpush.msra.mxu0 0.0
    %498 = vmatpush.msra.mxu0 0.0
    %499 = vmatpush.msra.mxu0 0.0
    %500 = vmatpush.msra.mxu0 0.0
    %501 = vmatpush.msra.mxu0 0.0
    %502 = vmatpush.msra.mxu0 0.0
    %503 = vmatpush.msra.mxu0 %v488
    %504 = vmatpush.msra.mxu0 %v487
    %505 = vmatmul.f32.gmra.mxu0 %v190
    %v506 = vpop.f32.mrf.mxu0
    %v507 = vadd.f32 0.0, %v506
    %508 = vmatmul.f32.gmra.mxu0 %v193
    %v509 = vpop.f32.mrf.mxu0
    %v510 = vadd.f32 0.0, %v509
    %511 = vdwg.mxu0
    %512 = vmatpush.msra.mxu0 0.0
    %513 = vmatpush.msra.mxu0 0.0
    %514 = vmatpush.msra.mxu0 0.0
    %515 = vmatpush.msra.mxu0 0.0
    %516 = vmatpush.msra.mxu0 0.0
    %517 = vmatpush.msra.mxu0 0.0
    %518 = vmatpush.msra.mxu0 0.0
    %519 = vmatpush.msra.mxu0 0.0
    %520 = vmatpush.msra.mxu0 0.0
    %521 = vmatpush.msra.mxu0 0.0
    %522 = vmatpush.msra.mxu0 0.0
    %523 = vmatpush.msra.mxu0 0.0
    %524 = vmatpush.msra.mxu0 0.0
    %525 = vmatpush.msra.mxu0 0.0
    %526 = vmatpush.msra.mxu0 %v510
    %527 = vmatpush.msra.mxu0 %v507
    %528 = vmatmul.f32.gmra.mxu0 %v264
    %v529 = vpop.f32.mrf.mxu0
    %v530 = vadd.f32 0.0, %v529
    %531 = vmatmul.f32.gmra.mxu0 %v267
    %v532 = vpop.f32.mrf.mxu0
    %v533 = vadd.f32 0.0, %v532
    %534 = vdwg.mxu0
    %v535 = vmul.f32 %v292, %v530
    %v536 = vmul.f32 %v292, %v533
    %v537 = vadd.f32 %v535, 0.0
    %v538 = vadd.f32 %v536, 0.0
    %539 = vmatpush.msra.mxu0 0.0
    %540 = vmatpush.msra.mxu0 0.0
    %541 = vmatpush.msra.mxu0 0.0
    %542 = vmatpush.msra.mxu0 0.0
    %543 = vmatpush.msra.mxu0 0.0
    %544 = vmatpush.msra.mxu0 0.0
    %545 = vmatpush.msra.mxu0 0.0
    %546 = vmatpush.msra.mxu0 0.0
    %547 = vmatpush.msra.mxu0 0.0
    %548 = vmatpush.msra.mxu0 0.0
    %549 = vmatpush.msra.mxu0 0.0
    %550 = vmatpush.msra.mxu0 0.0
    %551 = vmatpush.msra.mxu0 0.0
    %552 = vmatpush.msra.mxu0 0.0
    %553 = vmatpush.msra.mxu0 %v510
    %554 = vmatpush.msra.mxu0 %v507
    %555 = vmatmul.f32.gmra.mxu0 %v343
    %v556 = vpop.f32.mrf.mxu0
    %v557 = vadd.f32 0.0, %v556
    %558 = vmatmul.f32.gmra.mxu0 %v346
    %v559 = vpop.f32.mrf.mxu0
    %v560 = vadd.f32 0.0, %v559
    %561 = vdwg.mxu0
    %v562 = vmul.f32 %v371, %v557
    %v563 = vmul.f32 %v371, %v560
    %v564 = vadd.f32 %v537, %v562
    %v565 = vadd.f32 %v538, %v563
    %566 = vmatpush.msra.mxu0 0.0
    %567 = vmatpush.msra.mxu0 0.0
    %568 = vmatpush.msra.mxu0 0.0
    %569 = vmatpush.msra.mxu0 0.0
    %570 = vmatpush.msra.mxu0 0.0
    %571 = vmatpush.msra.mxu0 0.0
    %572 = vmatpush.msra.mxu0 0.0
    %573 = vmatpush.msra.mxu0 0.0
    %574 = vmatpush.msra.mxu0 0.0
    %575 = vmatpush.msra.mxu0 0.0
    %576 = vmatpush.msra.mxu0 0.0
    %577 = vmatpush.msra.mxu0 0.0
    %578 = vmatpush.msra.mxu0 0.0
    %579 = vmatpush.msra.mxu0 0.0
    %580 = vmatpush.msra.mxu0 %v510
    %581 = vmatpush.msra.mxu0 %v507
    %582 = vmatmul.f32.gmra.mxu0 %v422
    %v583 = vpop.f32.mrf.mxu0
    %v584 = vadd.f32 0.0, %v583
    %585 = vmatmul.f32.gmra.mxu0 %v425
    %v586 = vpop.f32.mrf.mxu0
    %v587 = vadd.f32 0.0, %v586
    %588 = vdwg.mxu0
    %v589 = vmul.f32 %v450, %v584
    %v590 = vmul.f32 %v450, %v587
    %v591 = vadd.f32 %v564, %v589
    %v592 = vadd.f32 %v565, %v590
    %v593 = vmul.f32 %v455, %v487
    %v594 = vmul.f32 %v455, %v488
    %595 = vmatpush.msra.mxu0 0.0
    %596 = vmatpush.msra.mxu0 0.0
    %597 = vmatpush.msra.mxu0 0.0
    %598 = vmatpush.msra.mxu0 0.0
    %599 = vmatpush.msra.mxu0 0.0
    %600 = vmatpush.msra.mxu0 0.0
    %601 = vmatpush.msra.mxu0 0.0
    %602 = vmatpush.msra.mxu0 0.0
    %603 = vmatpush.msra.mxu0 0.0
    %604 = vmatpush.msra.mxu0 0.0
    %605 = vmatpush.msra.mxu0 0.0
    %606 = vmatpush.msra.mxu0 0.0
    %607 = vmatpush.msra.mxu0 0.0
    %608 = vmatpush.msra.mxu0 0.0
    %609 = vmatpush.msra.mxu0 %v592
    %610 = vmatpush.msra.mxu0 %v591
    %611 = vmatmul.f32.gmra.mxu0 %v459
    %v612 = vpop.f32.mrf.mxu0
    %v613 = vadd.f32 0.0, %v612
    %614 = vmatmul.f32.gmra.mxu0 %v462
    %v615 = vpop.f32.mrf.mxu0
    %v616 = vadd.f32 0.0, %v615
    %617 = vdwg.mxu0
    %v618 = vadd.f32 %v593, %v613
    %v619 = vadd.f32 %v594, %v616
    %620 = vst [vmem:[#allocation14] sm:$0xff] %v618
    %621 = vst [vmem:[#allocation14 + $0x8] sm:$0xff] %v619
    // Predicated region
    $region54: #{tpu_custom_call.1} parent=1 // pred_check
      _
    $region55: #{tpu_custom_call.1} parent=1 // pred_check_branch
      %623 = sbr.rel (0) target = $region57
    $region56: #{tpu_custom_call.1} parent=1 // pred_region
      %625 = vsyncadd [#allocation5], 0
      %s626 = sshll.u32 [#allocation14], 4
      %s627 = int_to_ptr.vmem [resolvable:$true] %s626
      %s628 = sshll.u32 %s7, 4
      %s629 = int_to_ptr.hbm [resolvable:$true] %s628
      %634 = dma.vmem_to_hbm [thread:$0]  %s627, 256, %s629, [#allocation5], 128, 128, 8
    $region57: #{tpu_custom_call.1} parent=1 // pred_fallthru
      _
    // Predicated region
    $region58: #{tpu_custom_call.1} parent=1 // pred_check
      _
    $region59: #{tpu_custom_call.1} parent=1 // pred_check_branch
      %636 = sbr.rel (0) target = $region61
    $region60: #{tpu_custom_call.1} parent=1 // pred_region
      %638 = dma.done [#allocation5], 256
    $region61: #{tpu_custom_call.1} parent=1 // pred_fallthru
      _
    %639 = vsyncpa [#allocation4], 1
    %640 = vsyncpa [#allocation12], 1
    %641 = vsyncpa [#allocation5], 1
    %642 = vsyncpa [#allocation6], 1
    %643 = vsyncpa [#allocation8], 1

</llo_original>
